<compile_context>
chip_gen: v6e
topology: v6e:2x2x1
jax: 0.10.0
libtpu: 0.0.40
codegen_flags: <defaults>
</compile_context>

<pallas_src>
import jax
import jax.numpy as jnp
from jax import lax
from jax.experimental import pallas as pl
from jax.experimental.pallas import tpu as pltpu

# ----------------------------- configuration --------------------------------
B = 2                       # batch
H, W, C_IN = 16, 16, 4      # visual obs (NCHW in, like PyTorch)
VEC_DIM = 8                 # vector obs dim
ACTION_DIM = 4
MAX_ACTION = 2.0
KSIZE = 2                   # conv + pool kernel size (stride=1, pad=0, dil=1)
C_OUT = 4                   # conv out channels per network

H1, W1 = H - 1, W - 1       # after conv 2x2 stride 1     (15, 15)
H2, W2 = H1 - 1, W1 - 1     # after maxpool 2x2 stride 1  (14, 14)
R1 = H1 * W1                # 225 conv positions per channel (15x15 grid)
SPAD = 256                  # lane-padded spatial block (multiple of 128)
KK = KSIZE * KSIZE * C_IN   # 16 im2col taps
KK1 = KK + 1                # +1 constant tap carrying the conv bias
NCH = 2 * C_OUT             # 8 conv channels total: 0:4 actor, 4:8 critic
NHEAD = 8                   # head columns: 0:4 actor pre-tanh, col 4 critic q, 5:8 zero pad

VIS_FEAT = C_OUT * H2 * W2                      # 784
VEC_FEAT = VEC_DIM * 16                         # 128
ACTOR_CAT = VIS_FEAT + VEC_FEAT                 # 912
CRITIC_CAT = VIS_FEAT + VEC_FEAT + ACTION_DIM   # 916

# ---- packed parameter buffer layout (row offsets, all multiples of 8; 256 lanes wide) ----
R_WCONV, R_W1, R_B1 = 0, 8, 16
R_W2, R_B2 = 24, 88
R_W3, R_B3 = 96, 224
R_WACT, R_BACT = 232, 240
R_WHVEC, R_WHACT, R_BHEAD = 248, 256, 264
R_WBIG, R_DMASK, R_GT = 272, 336, 344
PAR_ROWS, PAR_COLS = 352, 256

_VMEM = pl.BlockSpec(memory_space=pltpu.MemorySpace.VMEM)


# ----------------------------- fused Pallas kernel --------------------------------
def fused_actor_critic_kernel(patches_ref,   # (KK1, B*SPAD) im2col patches (+ ones bias tap row)
                              xvec_ref,      # (B, VEC_DIM)
                              act_ref,       # (B, ACTION_DIM)
                              par_ref,       # (PAR_ROWS, PAR_COLS) packed parameters
                              out_ref):      # (B, NHEAD): cols 0:4 actor action, col 4 critic q
    f32 = jnp.float32
    TOT = B * SPAD

    # ---- static views into the single packed parameter buffer (zero-cost slices) ----
    wconv = par_ref[R_WCONV:R_WCONV + NCH, 0:KK1]                     # (8, 17)
    w1 = par_ref[R_W1:R_W1 + VEC_DIM, 0:8 * VEC_DIM]                  # (8, 64)
    b1 = par_ref[R_B1:R_B1 + 1, 0:8 * VEC_DIM]                        # (1, 64)
    w2 = par_ref[R_W2:R_W2 + 8 * VEC_DIM, 0:16 * VEC_DIM]             # (64, 128)
    b2 = par_ref[R_B2:R_B2 + 1, 0:16 * VEC_DIM]                       # (1, 128)
    w3 = par_ref[R_W3:R_W3 + 16 * VEC_DIM, 0:32 * VEC_DIM]            # (128, 256)
    b3 = par_ref[R_B3:R_B3 + 1, 0:32 * VEC_DIM]                       # (1, 256)
    wact = par_ref[R_WACT:R_WACT + ACTION_DIM, 0:ACTION_DIM]          # (4, 4)
    bact = par_ref[R_BACT:R_BACT + 1, 0:ACTION_DIM]                   # (1, 4)
    whvec_t = par_ref[R_WHVEC:R_WHVEC + NHEAD, 0:2 * VEC_FEAT]        # (8, 256)  lane-dense
    whact = par_ref[R_WHACT:R_WHACT + ACTION_DIM, 0:NHEAD]            # (4, 8)
    bhead = par_ref[R_BHEAD:R_BHEAD + 1, 0:NHEAD]                     # (1, 8)
    wbig_t = par_ref[R_WBIG:R_WBIG + NHEAD * NCH, 0:SPAD]             # (64, 256) lane-dense
    dmask = par_ref[R_DMASK:R_DMASK + NCH, 0:NHEAD * NCH]             # (8, 64) channel-diag mask
    gt = par_ref[R_GT:R_GT + NHEAD, 0:NHEAD * NCH]                    # (8, 64) head-group sum

    nt = (((1,), (1,)), ((), ()))   # contract minor-vs-minor ("A @ B.T")

    # ---- conv (+bias via the constant-1 tap) for actor & critic, both batches: one MXU matmul ----
    conv = jnp.dot(wconv, patches_ref[...], preferred_element_type=f32)      # (NCH, B*SPAD)

    # ---- 2x2 / stride-1 max-pool via XLU lane rolls on the 15x15 grid, then ReLU ----
    # shift SPAD-k brings conv[l+k] to lane l; wrap-around / invalid / pad lanes are killed by
    # the zero rows of wbig_t, so they never reach the outputs.
    m = conv
    m = jnp.maximum(m, pltpu.roll(conv, shift=TOT - 1, axis=1))              # (h,   w+1)
    m = jnp.maximum(m, pltpu.roll(conv, shift=TOT - W1, axis=1))             # (h+1, w  )
    m = jnp.maximum(m, pltpu.roll(conv, shift=TOT - W1 - 1, axis=1))         # (h+1, w+1)
    pooled = jnp.maximum(m, 0.0)                                             # (NCH, B*SPAD)

    # ---- visual-feature head contribution (actor cols 0:4, critic col 4) ----
    # tmp_b[c, n*NCH+c'] = sum_s pooled_b[c,s] * whead_vis[c',n,s]; the channel-diagonal mask +
    # sublane sum keeps c==c', and gt sums the 8-wide groups per head column.
    vrows = []
    for b in range(B):
        pooled_b = pooled[:, b * SPAD:(b + 1) * SPAD]                        # (NCH, SPAD)
        tmp_b = lax.dot_general(pooled_b, wbig_t, nt,
                                preferred_element_type=f32)                  # (NCH, NHEAD*NCH)
        vrows.append(jnp.sum(tmp_b * dmask, axis=0, keepdims=True))          # (1, NHEAD*NCH)
    v = jnp.concatenate(vrows, axis=0)                                       # (B, NHEAD*NCH)
    vis_heads = lax.dot_general(v, gt, nt, preferred_element_type=f32)       # (B, NHEAD)

    # ---- fused actor|critic vector MLP (block-diagonal weights) on the shared vector obs ----
    h = jnp.maximum(jnp.dot(xvec_ref[...], w1, preferred_element_type=f32) + b1, 0.0)
    h = jnp.maximum(jnp.dot(h, w2, preferred_element_type=f32) + b2, 0.0)
    h = jnp.maximum(jnp.dot(h, w3, preferred_element_type=f32) + b3, 0.0)    # (B, 256)

    # ---- critic action feature layer ----
    f_act = jnp.maximum(
        jnp.dot(act_ref[...], wact, preferred_element_type=f32) + bact, 0.0)  # (B, 4)

    # ---- output heads as partial-dot sums (no concatenation anywhere) ----
    heads = (vis_heads
             + lax.dot_general(h, whvec_t, nt, preferred_element_type=f32)
             + jnp.dot(f_act, whact, preferred_element_type=f32)
             + bhead)                                                        # (B, NHEAD)

    col = lax.broadcasted_iota(jnp.int32, (B, NHEAD), 1)
    out_ref[...] = jnp.where(col < ACTION_DIM, MAX_ACTION * jnp.tanh(heads), heads)


# ----------------------------- wrapper-side layout plumbing --------------------------------
def build_patches(x_vis):
    """(KK+1, B*SPAD) im2col patches on the 15x15 conv grid + a constant-1 bias-tap row.

    patches[k, b*SPAD + (h1*15 + w1)] = x_vis[b, ci, h1+dh, w1+dw],  k = (dh*2+dw)*C_IN + ci.
    Row KK is all ones (carries the conv bias through the matmul).  Lanes [225, 256) are zero pad.
    """
    bsz = x_vis.shape[0]
    x = jnp.transpose(x_vis, (0, 2, 3, 1))                               # NHWC
    taps = [x[:, dh:dh + H1, dw:dw + W1, :] for dh in range(KSIZE) for dw in range(KSIZE)]
    pt = jnp.concatenate(taps, axis=-1)                                  # (B, 15, 15, KK)
    pt = jnp.transpose(pt, (0, 3, 1, 2)).reshape(bsz, KK, R1)            # (B, KK, 225)
    pt = jnp.pad(pt, ((0, 0), (0, 0), (0, SPAD - R1)))                   # (B, KK, 256)
    ones = jnp.ones((bsz, 1, SPAD), jnp.float32)
    pt = jnp.concatenate([pt, ones], axis=1)                             # (B, KK1, 256)
    return jnp.transpose(pt, (1, 0, 2)).reshape(KK1, bsz * SPAD)


def actor_critic_forward(packed_params, state, action):
    x_vis, x_vec = state
    bsz = x_vis.shape[0]
    patches = build_patches(x_vis)
    out = pl.pallas_call(
        fused_actor_critic_kernel,
        out_shape=jax.ShapeDtypeStruct((bsz, NHEAD), jnp.float32),
        in_specs=[_VMEM, _VMEM, _VMEM, _VMEM],
        out_specs=_VMEM,
    )(patches, x_vec, action, packed_params)
    q1 = out[:, 0:ACTION_DIM]
    q2 = out[:, ACTION_DIM:ACTION_DIM + 1]
    return q1, q2


# ----------------------------- parameter init + one-time fusion --------------------------------
def _init_linear(key, fan_in, fan_out):
    kw, kb = jax.random.split(key)
    w = jax.random.normal(kw, (fan_in, fan_out), jnp.float32) / jnp.sqrt(jnp.float32(fan_in))
    b = 0.01 * jax.random.normal(kb, (1, fan_out), jnp.float32)
    return w, b


def _init_conv(key):
    kw, kb = jax.random.split(key)
    w4 = 0.1 * jax.random.normal(kw, (KSIZE, KSIZE, C_IN, C_OUT), jnp.float32)
    b = 0.01 * jax.random.normal(kb, (C_OUT,), jnp.float32)
    return w4, b


def init_params(seed=42):
    keys = jax.random.split(jax.random.PRNGKey(seed), 16)
    p = {}
    # ---- Actor ----
    p["a_conv_w4"], p["a_conv_b"] = _init_conv(keys[0])
    p["a_w1"], p["a_b1"] = _init_linear(keys[1], VEC_DIM, VEC_DIM * 4)
    p["a_w2"], p["a_b2"] = _init_linear(keys[2], VEC_DIM * 4, VEC_DIM * 8)
    p["a_w3"], p["a_b3"] = _init_linear(keys[3], VEC_DIM * 8, VEC_DIM * 16)
    p["a_out_w"], p["a_out_b"] = _init_linear(keys[4], ACTOR_CAT, ACTION_DIM)
    # ---- Critic ----
    p["c_conv_w4"], p["c_conv_b"] = _init_conv(keys[5])
    p["c_w1"], p["c_b1"] = _init_linear(keys[6], VEC_DIM, VEC_DIM * 4)
    p["c_w2"], p["c_b2"] = _init_linear(keys[7], VEC_DIM * 4, VEC_DIM * 8)
    p["c_w3"], p["c_b3"] = _init_linear(keys[8], VEC_DIM * 8, VEC_DIM * 16)
    p["c_act_w"], p["c_act_b"] = _init_linear(keys[9], ACTION_DIM, ACTION_DIM)
    p["c_out_w"], p["c_out_b"] = _init_linear(keys[10], CRITIC_CAT, 1)
    return p


def _block_diag2(a, b):
    r1 = jnp.concatenate([a, jnp.zeros((a.shape[0], b.shape[1]), a.dtype)], axis=1)
    r2 = jnp.concatenate([jnp.zeros((b.shape[0], a.shape[1]), a.dtype), b], axis=1)
    return jnp.concatenate([r1, r2], axis=0)


def fuse_params(p):
    """Fuse actor+critic weights and pack them into ONE lane-dense (PAR_ROWS, 256) buffer."""
    buf = jnp.zeros((PAR_ROWS, PAR_COLS), jnp.float32)

    def put(b, r, a):
        return b.at[r:r + a.shape[0], 0:a.shape[1]].set(a.astype(jnp.float32))

    # conv weights, combined along Cout (0:4 actor, 4:8 critic); bias as an extra im2col tap
    wa = p["a_conv_w4"].reshape(KK, C_OUT)
    wc = p["c_conv_w4"].reshape(KK, C_OUT)
    wconv_t = jnp.concatenate([wa, wc], axis=1).T                               # (8, 16)
    bconv = jnp.concatenate([p["a_conv_b"], p["c_conv_b"]]).reshape(NCH, 1)
    buf = put(buf, R_WCONV, jnp.concatenate([wconv_t, bconv], axis=1))          # (8, 17)

    # fused (actor|critic) vector MLP: shared input layer 1, block-diagonal layers 2 & 3
    buf = put(buf, R_W1, jnp.concatenate([p["a_w1"], p["c_w1"]], axis=1))       # (8, 64)
    buf = put(buf, R_B1, jnp.concatenate([p["a_b1"], p["c_b1"]], axis=1))       # (1, 64)
    buf = put(buf, R_W2, _block_diag2(p["a_w2"], p["c_w2"]))                    # (64, 128)
    buf = put(buf, R_B2, jnp.concatenate([p["a_b2"], p["c_b2"]], axis=1))       # (1, 128)
    buf = put(buf, R_W3, _block_diag2(p["a_w3"], p["c_w3"]))                    # (128, 256)
    buf = put(buf, R_B3, jnp.concatenate([p["a_b3"], p["c_b3"]], axis=1))       # (1, 256)

    # critic action feature layer
    buf = put(buf, R_WACT, p["c_act_w"])                                        # (4, 4)
    buf = put(buf, R_BACT, p["c_act_b"])                                        # (1, 4)

    # heads: columns 0:4 actor pre-tanh, column 4 critic q, columns 5:8 zero
    wa_out, wc_out = p["a_out_w"], p["c_out_w"]                                 # (912,4), (916,1)

    # vector-feature part, stored transposed (lane-dense)
    whvec = jnp.zeros((2 * VEC_FEAT, NHEAD), jnp.float32)
    whvec = whvec.at[0:VEC_FEAT, 0:ACTION_DIM].set(wa_out[VIS_FEAT:VIS_FEAT + VEC_FEAT])
    whvec = whvec.at[VEC_FEAT:, ACTION_DIM:ACTION_DIM + 1].set(wc_out[VIS_FEAT:VIS_FEAT + VEC_FEAT])
    buf = put(buf, R_WHVEC, whvec.T)                                            # (8, 256)

    # action part of the critic head + head biases
    whact = jnp.zeros((ACTION_DIM, NHEAD), jnp.float32)
    whact = whact.at[:, ACTION_DIM:ACTION_DIM + 1].set(wc_out[VIS_FEAT + VEC_FEAT:])
    buf = put(buf, R_WHACT, whact)                                              # (4, 8)
    bhead = jnp.zeros((1, NHEAD), jnp.float32)
    bhead = bhead.at[:, 0:ACTION_DIM].set(p["a_out_b"])
    bhead = bhead.at[:, ACTION_DIM:ACTION_DIM + 1].set(p["c_out_b"])
    buf = put(buf, R_BHEAD, bhead)

    # visual-feature head weights re-indexed to the un-pooled 15x15 conv grid (l = h2*15 + w2);
    # rows for h2==14 / w2==14 / pad lanes are zero, which kills max-pool roll wrap-around.
    whv = jnp.zeros((NCH, NHEAD, H1, W1), jnp.float32)
    wa_vis = wa_out[:VIS_FEAT].reshape(C_OUT, H2, W2, ACTION_DIM)
    wc_vis = wc_out[:VIS_FEAT].reshape(C_OUT, H2, W2, 1)
    whv = whv.at[0:C_OUT, 0:ACTION_DIM, 0:H2, 0:W2].set(jnp.transpose(wa_vis, (0, 3, 1, 2)))
    whv = whv.at[C_OUT:NCH, ACTION_DIM:ACTION_DIM + 1, 0:H2, 0:W2].set(
        jnp.transpose(wc_vis, (0, 3, 1, 2)))
    whv = jnp.pad(whv.reshape(NCH, NHEAD, R1), ((0, 0), (0, 0), (0, SPAD - R1)))  # (8, 8, 256)
    # wbig_t[n*NCH + c, s] = whv[c, n, s]   (lane-dense, used via an "A @ B.T" dot)
    buf = put(buf, R_WBIG, jnp.transpose(whv, (1, 0, 2)).reshape(NHEAD * NCH, SPAD))

    # channel-diagonal selection mask and per-head group-sum matrix for the visual head
    dmask = jnp.tile(jnp.eye(NCH, dtype=jnp.float32), (1, NHEAD))               # (8, 64)
    gt = jnp.repeat(jnp.eye(NHEAD, dtype=jnp.float32), NCH, axis=1)             # (8, 64)
    buf = put(buf, R_DMASK, dmask)
    buf = put(buf, R_GT, gt)
    return buf


# ----------------------------- pure-JAX reference --------------------------------
def _ref_conv_pool_relu(x, w4, b):
    rhs = jnp.transpose(w4, (3, 2, 0, 1))  # OIHW
    conv = lax.conv_general_dilated(x, rhs, window_strides=(1, 1), padding="VALID",
                                    dimension_numbers=("NCHW", "OIHW", "NCHW"))
    conv = conv + b[None, :, None, None]
    pooled = lax.reduce_window(conv, -jnp.inf, lax.max, (1, 1, 2, 2), (1, 1, 1, 1), "VALID")
    return jnp.maximum(pooled, 0.0)


def _ref_mlp3(x, w1, b1, w2, b2, w3, b3):
    h = jnp.maximum(x @ w1 + b1, 0.0)
    h = jnp.maximum(h @ w2 + b2, 0.0)
    return jnp.maximum(h @ w3 + b3, 0.0)


def _ref_forward(p, state, action):
    x_vis, x_vec = state
    fa_vis = _ref_conv_pool_relu(x_vis, p["a_conv_w4"], p["a_conv_b"]).reshape(x_vis.shape[0], -1)
    fa_vec = _ref_mlp3(x_vec, p["a_w1"], p["a_b1"], p["a_w2"], p["a_b2"], p["a_w3"], p["a_b3"])
    fa = jnp.concatenate([fa_vis, fa_vec], axis=1)
    q1 = MAX_ACTION * jnp.tanh(fa @ p["a_out_w"] + p["a_out_b"])
    fc_vis = _ref_conv_pool_relu(x_vis, p["c_conv_w4"], p["c_conv_b"]).reshape(x_vis.shape[0], -1)
    fc_vec = _ref_mlp3(x_vec, p["c_w1"], p["c_b1"], p["c_w2"], p["c_b2"], p["c_w3"], p["c_b3"])
    fc_act = jnp.maximum(action @ p["c_act_w"] + p["c_act_b"], 0.0)
    fc = jnp.concatenate([fc_vis, fc_vec, fc_act], axis=1)
    q2 = fc @ p["c_out_w"] + p["c_out_b"]
    return q1, q2


# ----------------------------- main --------------------------------
if __name__ == "__main__":
    key = jax.random.PRNGKey(0)
    k_vis, k_vec, k_act = jax.random.split(key, 3)

    x_vis = jax.random.normal(k_vis, (B, C_IN, H, W), jnp.float32)   # NCHW visual obs
    x_vec = jax.random.normal(k_vec, (B, VEC_DIM), jnp.float32)      # vector obs
    action = jax.random.normal(k_act, (B, ACTION_DIM), jnp.float32)

    params = init_params(seed=42)
    packed = jax.block_until_ready(fuse_params(params))   # one-time weight fusion / packing

    fwd = jax.jit(actor_critic_forward)
    q1, q2 = fwd(packed, (x_vis, x_vec), action)
    jax.block_until_ready((q1, q2))

    # correctness check against a pure-JAX reference built from the un-fused parameters
    q1_ref, q2_ref = _ref_forward(params, (x_vis, x_vec), action)
    assert q1.shape == (B, ACTION_DIM) and q2.shape == (B, 1)
    assert jnp.allclose(q1, q1_ref, atol=1e-3, rtol=1e-3), "actor mismatch"
    assert jnp.allclose(q2, q2_ref, atol=1e-3, rtol=1e-3), "critic mismatch"

    print("KERNEL_OK")
</pallas_src>

<mosaic_0001>
module attributes {stable_mosaic.version = 11 : i64} {
  func.func @fused_actor_critic_kernel(%arg0: memref<17x512xf32, #tpu.memory_space<vmem>>, %arg1: memref<2x8xf32, #tpu.memory_space<vmem>>, %arg2: memref<2x4xf32, #tpu.memory_space<vmem>>, %arg3: memref<352x256xf32, #tpu.memory_space<vmem>>, %arg4: memref<2x8xf32, #tpu.memory_space<vmem>>) attributes {dimension_semantics = [], scalar_prefetch = 0 : i64, scratch_operands = 0 : i64, tpu.core_type = #tpu.core_type<tc>} {
    %c0 = arith.constant 0 : index
    %c0_0 = arith.constant 0 : index
    %0 = vector.load %arg3[%c0, %c0_0] : memref<352x256xf32, #tpu.memory_space<vmem>>, vector<8x17xf32>
    %c8 = arith.constant 8 : index
    %c0_1 = arith.constant 0 : index
    %1 = vector.load %arg3[%c8, %c0_1] : memref<352x256xf32, #tpu.memory_space<vmem>>, vector<8x64xf32>
    %c16 = arith.constant 16 : index
    %c0_2 = arith.constant 0 : index
    %2 = vector.load %arg3[%c16, %c0_2] : memref<352x256xf32, #tpu.memory_space<vmem>>, vector<1x64xf32>
    %c24 = arith.constant 24 : index
    %c0_3 = arith.constant 0 : index
    %3 = vector.load %arg3[%c24, %c0_3] : memref<352x256xf32, #tpu.memory_space<vmem>>, vector<64x128xf32>
    %c88 = arith.constant 88 : index
    %c0_4 = arith.constant 0 : index
    %4 = vector.load %arg3[%c88, %c0_4] : memref<352x256xf32, #tpu.memory_space<vmem>>, vector<1x128xf32>
    %c96 = arith.constant 96 : index
    %c0_5 = arith.constant 0 : index
    %5 = vector.load %arg3[%c96, %c0_5] : memref<352x256xf32, #tpu.memory_space<vmem>>, vector<128x256xf32>
    %c224 = arith.constant 224 : index
    %c0_6 = arith.constant 0 : index
    %6 = vector.load %arg3[%c224, %c0_6] : memref<352x256xf32, #tpu.memory_space<vmem>>, vector<1x256xf32>
    %c232 = arith.constant 232 : index
    %c0_7 = arith.constant 0 : index
    %7 = vector.load %arg3[%c232, %c0_7] : memref<352x256xf32, #tpu.memory_space<vmem>>, vector<4x4xf32>
    %c240 = arith.constant 240 : index
    %c0_8 = arith.constant 0 : index
    %8 = vector.load %arg3[%c240, %c0_8] : memref<352x256xf32, #tpu.memory_space<vmem>>, vector<1x4xf32>
    %c248 = arith.constant 248 : index
    %c0_9 = arith.constant 0 : index
    %9 = vector.load %arg3[%c248, %c0_9] : memref<352x256xf32, #tpu.memory_space<vmem>>, vector<8x256xf32>
    %c256 = arith.constant 256 : index
    %c0_10 = arith.constant 0 : index
    %10 = vector.load %arg3[%c256, %c0_10] : memref<352x256xf32, #tpu.memory_space<vmem>>, vector<4x8xf32>
    %c264 = arith.constant 264 : index
    %c0_11 = arith.constant 0 : index
    %11 = vector.load %arg3[%c264, %c0_11] : memref<352x256xf32, #tpu.memory_space<vmem>>, vector<1x8xf32>
    %c272 = arith.constant 272 : index
    %c0_12 = arith.constant 0 : index
    %12 = vector.load %arg3[%c272, %c0_12] : memref<352x256xf32, #tpu.memory_space<vmem>>, vector<64x256xf32>
    %c336 = arith.constant 336 : index
    %c0_13 = arith.constant 0 : index
    %13 = vector.load %arg3[%c336, %c0_13] : memref<352x256xf32, #tpu.memory_space<vmem>>, vector<8x64xf32>
    %c344 = arith.constant 344 : index
    %c0_14 = arith.constant 0 : index
    %14 = vector.load %arg3[%c344, %c0_14] : memref<352x256xf32, #tpu.memory_space<vmem>>, vector<8x64xf32>
    %c0_15 = arith.constant 0 : index
    %c0_16 = arith.constant 0 : index
    %15 = vector.load %arg0[%c0_15, %c0_16] : memref<17x512xf32, #tpu.memory_space<vmem>>, vector<17x512xf32>
    %cst = arith.constant dense<0.000000e+00> : vector<8x512xf32>
    %16 = tpu.matmul %0, %15, %cst {dimension_numbers = #tpu.dot_dimension_numbers<[1], [0], [0], [1], [0, 0, 1, 1], [], []>} : vector<8x17xf32>, vector<17x512xf32>, vector<8x512xf32> -> vector<8x512xf32>
    %c511_i32 = arith.constant 511 : i32
    %17 = tpu.dynamic_rotate %16 by %c511_i32 dim 1 : vector<8x512xf32>, i32 -> vector<8x512xf32>
    %18 = arith.maximumf %16, %17 : vector<8x512xf32>
    %c497_i32 = arith.constant 497 : i32
    %19 = tpu.dynamic_rotate %16 by %c497_i32 dim 1 : vector<8x512xf32>, i32 -> vector<8x512xf32>
    %20 = arith.maximumf %18, %19 : vector<8x512xf32>
    %c496_i32 = arith.constant 496 : i32
    %21 = tpu.dynamic_rotate %16 by %c496_i32 dim 1 : vector<8x512xf32>, i32 -> vector<8x512xf32>
    %22 = arith.maximumf %20, %21 : vector<8x512xf32>
    %cst_17 = arith.constant 0.000000e+00 : f32
    %23 = vector.broadcast %cst_17 : f32 to vector<8x512xf32>
    %24 = arith.maximumf %22, %23 : vector<8x512xf32>
    %25 = vector.extract_strided_slice %24 {offsets = [0, 0], sizes = [8, 256], strides = [1, 1]} : vector<8x512xf32> to vector<8x256xf32>
    %cst_18 = arith.constant dense<0.000000e+00> : vector<8x64xf32>
    %26 = tpu.matmul %25, %12, %cst_18 {dimension_numbers = #tpu.dot_dimension_numbers<[1], [1], [0], [0], [0, 0, 1, 0], [], []>} : vector<8x256xf32>, vector<64x256xf32>, vector<8x64xf32> -> vector<8x64xf32>
    %27 = arith.mulf %26, %13 : vector<8x64xf32>
    %cst_19 = arith.constant dense<0.000000e+00> : vector<64xf32>
    %28 = vector.multi_reduction <add>, %27, %cst_19 [0] : vector<8x64xf32> to vector<64xf32>
    %29 = vector.shape_cast %28 : vector<64xf32> to vector<1x64xf32>
    %30 = vector.extract_strided_slice %24 {offsets = [0, 256], sizes = [8, 256], strides = [1, 1]} : vector<8x512xf32> to vector<8x256xf32>
    %cst_20 = arith.constant dense<0.000000e+00> : vector<8x64xf32>
    %31 = tpu.matmul %30, %12, %cst_20 {dimension_numbers = #tpu.dot_dimension_numbers<[1], [1], [0], [0], [0, 0, 1, 0], [], []>} : vector<8x256xf32>, vector<64x256xf32>, vector<8x64xf32> -> vector<8x64xf32>
    %32 = arith.mulf %31, %13 : vector<8x64xf32>
    %cst_21 = arith.constant dense<0.000000e+00> : vector<64xf32>
    %33 = vector.multi_reduction <add>, %32, %cst_21 [0] : vector<8x64xf32> to vector<64xf32>
    %34 = vector.shape_cast %33 : vector<64xf32> to vector<1x64xf32>
    %35 = tpu.concatenate %29, %34 in 0 : vector<1x64xf32>, vector<1x64xf32> -> vector<2x64xf32>
    %cst_22 = arith.constant dense<0.000000e+00> : vector<2x8xf32>
    %36 = tpu.matmul %35, %14, %cst_22 {dimension_numbers = #tpu.dot_dimension_numbers<[1], [1], [0], [0], [0, 0, 1, 0], [], []>} : vector<2x64xf32>, vector<8x64xf32>, vector<2x8xf32> -> vector<2x8xf32>
    %c0_23 = arith.constant 0 : index
    %c0_24 = arith.constant 0 : index
    %37 = vector.load %arg1[%c0_23, %c0_24] : memref<2x8xf32, #tpu.memory_space<vmem>>, vector<2x8xf32>
    %cst_25 = arith.constant dense<0.000000e+00> : vector<2x64xf32>
    %38 = tpu.matmul %37, %1, %cst_25 {dimension_numbers = #tpu.dot_dimension_numbers<[1], [0], [0], [1], [0, 0, 1, 1], [], []>} : vector<2x8xf32>, vector<8x64xf32>, vector<2x64xf32> -> vector<2x64xf32>
    %39 = vector.broadcast %2 : vector<1x64xf32> to vector<2x64xf32>
    %40 = arith.addf %38, %39 : vector<2x64xf32>
    %cst_26 = arith.constant 0.000000e+00 : f32
    %41 = vector.broadcast %cst_26 : f32 to vector<2x64xf32>
    %42 = arith.maximumf %40, %41 : vector<2x64xf32>
    %cst_27 = arith.constant dense<0.000000e+00> : vector<2x128xf32>
    %43 = tpu.matmul %42, %3, %cst_27 {dimension_numbers = #tpu.dot_dimension_numbers<[1], [0], [0], [1], [0, 0, 1, 1], [], []>} : vector<2x64xf32>, vector<64x128xf32>, vector<2x128xf32> -> vector<2x128xf32>
    %44 = vector.broadcast %4 : vector<1x128xf32> to vector<2x128xf32>
    %45 = arith.addf %43, %44 : vector<2x128xf32>
    %cst_28 = arith.constant 0.000000e+00 : f32
    %46 = vector.broadcast %cst_28 : f32 to vector<2x128xf32>
    %47 = arith.maximumf %45, %46 : vector<2x128xf32>
    %cst_29 = arith.constant dense<0.000000e+00> : vector<2x256xf32>
    %48 = tpu.matmul %47, %5, %cst_29 {dimension_numbers = #tpu.dot_dimension_numbers<[1], [0], [0], [1], [0, 0, 1, 1], [], []>} : vector<2x128xf32>, vector<128x256xf32>, vector<2x256xf32> -> vector<2x256xf32>
    %49 = vector.broadcast %6 : vector<1x256xf32> to vector<2x256xf32>
    %50 = arith.addf %48, %49 : vector<2x256xf32>
    %cst_30 = arith.constant 0.000000e+00 : f32
    %51 = vector.broadcast %cst_30 : f32 to vector<2x256xf32>
    %52 = arith.maximumf %50, %51 : vector<2x256xf32>
    %c0_31 = arith.constant 0 : index
    %c0_32 = arith.constant 0 : index
    %53 = vector.load %arg2[%c0_31, %c0_32] : memref<2x4xf32, #tpu.memory_space<vmem>>, vector<2x4xf32>
    %cst_33 = arith.constant dense<0.000000e+00> : vector<2x4xf32>
    %54 = tpu.matmul %53, %7, %cst_33 {dimension_numbers = #tpu.dot_dimension_numbers<[1], [0], [0], [1], [0, 0, 1, 1], [], []>} : vector<2x4xf32>, vector<4x4xf32>, vector<2x4xf32> -> vector<2x4xf32>
    %55 = vector.broadcast %8 : vector<1x4xf32> to vector<2x4xf32>
    %56 = arith.addf %54, %55 : vector<2x4xf32>
    %cst_34 = arith.constant 0.000000e+00 : f32
    %57 = vector.broadcast %cst_34 : f32 to vector<2x4xf32>
    %58 = arith.maximumf %56, %57 : vector<2x4xf32>
    %cst_35 = arith.constant dense<0.000000e+00> : vector<2x8xf32>
    %59 = tpu.matmul %52, %9, %cst_35 {dimension_numbers = #tpu.dot_dimension_numbers<[1], [1], [0], [0], [0, 0, 1, 0], [], []>} : vector<2x256xf32>, vector<8x256xf32>, vector<2x8xf32> -> vector<2x8xf32>
    %60 = arith.addf %36, %59 : vector<2x8xf32>
    %cst_36 = arith.constant dense<0.000000e+00> : vector<2x8xf32>
    %61 = tpu.matmul %58, %10, %cst_36 {dimension_numbers = #tpu.dot_dimension_numbers<[1], [0], [0], [1], [0, 0, 1, 1], [], []>} : vector<2x4xf32>, vector<4x8xf32>, vector<2x8xf32> -> vector<2x8xf32>
    %62 = arith.addf %60, %61 : vector<2x8xf32>
    %63 = vector.broadcast %11 : vector<1x8xf32> to vector<2x8xf32>
    %64 = arith.addf %62, %63 : vector<2x8xf32>
    %65 = tpu.iota {dimensions = array<i32: 1>} : vector<2x8xi32>
    %c4_i32 = arith.constant 4 : i32
    %66 = vector.broadcast %c4_i32 : i32 to vector<2x8xi32>
    %67 = arith.cmpi slt, %65, %66 : vector<2x8xi32>
    %68 = math.tanh %64 : vector<2x8xf32>
    %cst_37 = arith.constant 2.000000e+00 : f32
    %69 = vector.broadcast %cst_37 : f32 to vector<2x8xf32>
    %70 = arith.mulf %69, %68 : vector<2x8xf32>
    %71 = arith.select %67, %70, %64 : vector<2x8xi1>, vector<2x8xf32>
    %c0_38 = arith.constant 0 : index
    %c0_39 = arith.constant 0 : index
    %72 = vector.load %arg4[%c0_38, %c0_39] : memref<2x8xf32, #tpu.memory_space<vmem>>, vector<2x8xf32>
    tpu.vector_store %arg4[%c0_38, %c0_39], %71 {strides = array<i32>} : memref<2x8xf32, #tpu.memory_space<vmem>>, vector<2x8xf32>,
    return
  }
}

</mosaic_0001>

<llo_original>
// kernel: actor_critic_forward.1
$region0: #{actor_critic_forward.1}
  #allocation0 [shape = 'u32[]', space=smem, size = 0x4, offset = 0x4, fixed_abs, tag = 'smem constant byte address 0x4 - core index']
  #allocation1 [shape = 'u32[144,128]{1,0:T(1,128)}', space=vmem, size = 0x12000, scoped, tag = 'internal scratch']
  %s0 = inlined_call_operand.vmem [shape: f32[17,512], index: 0, kind: input, shape index: {}]
  %s1 = inlined_call_operand.vmem [shape: f32[2,8], index: 1, kind: input, shape index: {}]
  %s2 = inlined_call_operand.vmem [shape: f32[2,4], index: 2, kind: input, shape index: {}]
  %s3 = inlined_call_operand.vmem [shape: f32[352,256], index: 3, kind: input, shape index: {}]
  %s4 = inlined_call_operand.vmem [shape: f32[2,8], index: 4, kind: output, shape index: {}]
  %s5 = sld [smem:[#allocation0]]
  $region26: #{actor_critic_forward.1} parent=0
    _
  %s7 = ssub.s32 1, %s5
  %s8 = scalar_select 0, %s7, %s5
  // Predicated region
  $region2: #{actor_critic_forward.1} parent=0 // pred_check
    _
  $region3: #{actor_critic_forward.1} parent=0 // pred_check_branch
    %10 = sbr.rel (0) target = $region5
  $region4: #{actor_critic_forward.1} parent=0 // pred_region
    _
  $region5: #{actor_critic_forward.1} parent=0 // pred_fallthru
    _
  // Predicated region
  $region6: #{actor_critic_forward.1} parent=0 // pred_check
    _
  $region7: #{actor_critic_forward.1} parent=0 // pred_check_branch
    %12 = sbr.rel (0) target = $region9
  $region8: #{actor_critic_forward.1} parent=0 // pred_region
    _
  $region9: #{actor_critic_forward.1} parent=0 // pred_fallthru
    _
  // Predicated region
  $region10: #{actor_critic_forward.1} parent=0 // pred_check
    _
  $region11: #{actor_critic_forward.1} parent=0 // pred_check_branch
    %14 = sbr.rel (0) target = $region13
  $region12: #{actor_critic_forward.1} parent=0 // pred_region
    _
  $region13: #{actor_critic_forward.1} parent=0 // pred_fallthru
    _
  // Predicated region
  $region14: #{actor_critic_forward.1} parent=0 // pred_check
    _
  $region15: #{actor_critic_forward.1} parent=0 // pred_check_branch
    %16 = sbr.rel (0) target = $region17
  $region16: #{actor_critic_forward.1} parent=0 // pred_region
    _
  $region17: #{actor_critic_forward.1} parent=0 // pred_fallthru
    _
  %v17 = vld [vmem:[%s3] sm:$0xff]
  %v18 = vld [vmem:[%s3 + $0x10] sm:$0xff]
  %v19 = vld [vmem:[%s3 + $0x20] ss:$0 sm:$0xff]
  %v20 = vld [vmem:[%s3 + $0x30] sm:$0xff]
  %v21 = vld [vmem:[%s3 + $0x40] sm:$0xff]
  %v22 = vld [vmem:[%s3 + $0x50] sm:$0xff]
  %v23 = vld [vmem:[%s3 + $0x60] sm:$0xff]
  %v24 = vld [vmem:[%s3 + $0x70] sm:$0xff]
  %v25 = vld [vmem:[%s3 + $0x80] sm:$0xff]
  %v26 = vld [vmem:[%s3 + $0x90] sm:$0xff]
  %v27 = vld [vmem:[%s3 + $0xa0] sm:$0xff]
  %v28 = vld [vmem:[%s3 + $0xb0] ss:$0 sm:$0xff]
  %v29 = vld [vmem:[%s3 + $0xc0] sm:$0xff]
  %v30 = vld [vmem:[%s3 + $0xc8] sm:$0xff]
  %v31 = vld [vmem:[%s3 + $0xd0] sm:$0xff]
  %v32 = vld [vmem:[%s3 + $0xd8] sm:$0xff]
  %v33 = vld [vmem:[%s3 + $0xe0] sm:$0xff]
  %v34 = vld [vmem:[%s3 + $0xe8] sm:$0xff]
  %v35 = vld [vmem:[%s3 + $0xf0] sm:$0xff]
  %v36 = vld [vmem:[%s3 + $0xf8] sm:$0xff]
  %v37 = vld [vmem:[%s3 + $0x100] sm:$0xff]
  %v38 = vld [vmem:[%s3 + $0x108] sm:$0xff]
  %v39 = vld [vmem:[%s3 + $0x110] sm:$0xff]
  %v40 = vld [vmem:[%s3 + $0x118] sm:$0xff]
  %v41 = vld [vmem:[%s3 + $0x120] sm:$0xff]
  %v42 = vld [vmem:[%s3 + $0x128] sm:$0xff]
  %v43 = vld [vmem:[%s3 + $0x130] sm:$0xff]
  %v44 = vld [vmem:[%s3 + $0x138] sm:$0xff]
  %v45 = vld [vmem:[%s3 + $0x140] sm:$0xff]
  %v46 = vld [vmem:[%s3 + $0x148] sm:$0xff]
  %v47 = vld [vmem:[%s3 + $0x150] sm:$0xff]
  %v48 = vld [vmem:[%s3 + $0x158] sm:$0xff]
  %v49 = vld [vmem:[%s3 + $0x160] sm:$0xff]
  %v50 = vld [vmem:[%s3 + $0x168] sm:$0xff]
  %v51 = vld [vmem:[%s3 + $0x170] sm:$0xff]
  %v52 = vld [vmem:[%s3 + $0x178] sm:$0xff]
  %v53 = vld [vmem:[%s3 + $0x180] sm:$0xff]
  %v54 = vld [vmem:[%s3 + $0x188] sm:$0xff]
  %v55 = vld [vmem:[%s3 + $0x190] sm:$0xff]
  %v56 = vld [vmem:[%s3 + $0x198] sm:$0xff]
  %v57 = vld [vmem:[%s3 + $0x1a0] sm:$0xff]
  %v58 = vld [vmem:[%s3 + $0x1a8] sm:$0xff]
  %v59 = vld [vmem:[%s3 + $0x1b0] sm:$0xff]
  %v60 = vld [vmem:[%s3 + $0x1b8] sm:$0xff]
  %s61 = scalar_lea.vmem %s3, 448
  %v62 = vld [vmem:[%s61] ss:$8 sm:$0x3]
  %v63 = vld [vmem:[%s3 + $0x1d0] sm:$0xf]
  %v64 = vld [vmem:[%s3 + $0x1e0] ss:$0 sm:$0xff]
  %v65 = vld [vmem:[%s3 + $0x1f0] sm:$0xff]
  %v66 = vld [vmem:[%s3 + $0x1f8] sm:$0xff]
  %v67 = vld [vmem:[%s3 + $0x200] sm:$0xf]
  %v68 = vld [vmem:[%s3 + $0x210] ss:$0 sm:$0xff]
  %v69 = vld [vmem:[%s3 + $0x220] sm:$0xff]
  %v70 = vld [vmem:[%s3 + $0x228] sm:$0xff]
  %v71 = vld [vmem:[%s3 + $0x230] sm:$0xff]
  %v72 = vld [vmem:[%s3 + $0x238] sm:$0xff]
  %v73 = vld [vmem:[%s3 + $0x240] sm:$0xff]
  %v74 = vld [vmem:[%s3 + $0x248] sm:$0xff]
  %v75 = vld [vmem:[%s3 + $0x250] sm:$0xff]
  %v76 = vld [vmem:[%s3 + $0x258] sm:$0xff]
  %v77 = vld [vmem:[%s3 + $0x260] sm:$0xff]
  %v78 = vld [vmem:[%s3 + $0x268] sm:$0xff]
  %v79 = vld [vmem:[%s3 + $0x270] sm:$0xff]
  %v80 = vld [vmem:[%s3 + $0x278] sm:$0xff]
  %v81 = vld [vmem:[%s3 + $0x280] sm:$0xff]
  %v82 = vld [vmem:[%s3 + $0x288] sm:$0xff]
  %v83 = vld [vmem:[%s3 + $0x290] sm:$0xff]
  %v84 = vld [vmem:[%s3 + $0x298] sm:$0xff]
  %v85 = vld [vmem:[%s3 + $0x2a0] sm:$0xff]
  %v86 = vld [vmem:[%s3 + $0x2b0] sm:$0xff]
  %v87 = vld [vmem:[%s0] sm:$0xff]
  %v88 = vld [vmem:[%s0 + $0x8] sm:$0xff]
  %v89 = vld [vmem:[%s0 + $0x10] sm:$0xff]
  %v90 = vld [vmem:[%s0 + $0x18] sm:$0xff]
  %v91 = vld [vmem:[%s0 + $0x20] sm:$0xff]
  %v92 = vld [vmem:[%s0 + $0x28] sm:$0xff]
  %v93 = vld [vmem:[%s0 + $0x30] sm:$0xff]
  %v94 = vld [vmem:[%s0 + $0x38] sm:$0xff]
  %v95 = vld [vmem:[%s0 + $0x40] sm:$0x1]
  %v96 = vld [vmem:[%s0 + $0x48] sm:$0x1]
  %v97 = vld [vmem:[%s0 + $0x50] sm:$0x1]
  %v98 = vld [vmem:[%s0 + $0x58] sm:$0x1]
  %vm99 = vcmask 138240
  %v101 = vsel %vm99, %v17, 0
  %vm103 = vcmask 1040384
  %v105 = vsel %vm103, %v95, 0
  %v108 = vsel %vm103, %v96, 0
  %v111 = vsel %vm103, %v97, 0
  %v114 = vsel %vm103, %v98, 0
  %116 = vmatprep.subr.mxu0 0.0
  %117 = vmatpush1.msra.mxu0 0.0
  %118 = vmatprep.subr.mxu0 0.0
  %119 = vmatpush1.msra.mxu0 0.0
  %120 = vmatprep.subr.mxu0 0.0
  %121 = vmatpush1.msra.mxu0 0.0
  %122 = vmatprep.subr.mxu0 0.0
  %123 = vmatpush1.msra.mxu0 0.0
  %124 = vmatprep.subr.mxu0 0.0
  %125 = vmatpush1.msra.mxu0 0.0
  %126 = vmatprep.subr.mxu0 0.0
  %127 = vmatpush1.msra.mxu0 0.0
  %128 = vmatprep.subr.mxu0 0.0
  %129 = vmatpush1.msra.mxu0 0.0
  %130 = vmatprep.subr.mxu0 0.0
  %131 = vmatpush1.msra.mxu0 0.0
  %132 = vmatprep.subr.mxu0 0.0
  %133 = vmatpush1.msra.mxu0 0.0
  %134 = vmatprep.subr.mxu0 0.0
  %135 = vmatpush1.msra.mxu0 0.0
  %136 = vmatprep.subr.mxu0 0.0
  %137 = vmatpush1.msra.mxu0 0.0
  %138 = vmatprep.subr.mxu0 0.0
  %139 = vmatpush1.msra.mxu0 0.0
  %140 = vmatprep.subr.mxu0 0.0
  %141 = vmatpush1.msra.mxu0 0.0
  %142 = vmatprep.subr.mxu0 %v108
  %143 = vmatpush1.msra.mxu0 %v105
  %144 = vmatprep.subr.mxu0 %v92
  %145 = vmatpush1.msra.mxu0 %v91
  %146 = vmatprep.subr.mxu0 %v88
  %147 = vmatpush1.msra.mxu0 %v87
  %148 = vmatprep.subr.mxu0 0.0
  %149 = vmatpush2.msra.mxu0 0.0
  %150 = vmatprep.subr.mxu0 0.0
  %151 = vmatpush2.msra.mxu0 0.0
  %152 = vmatprep.subr.mxu0 0.0
  %153 = vmatpush2.msra.mxu0 0.0
  %154 = vmatprep.subr.mxu0 0.0
  %155 = vmatpush2.msra.mxu0 0.0
  %156 = vmatprep.subr.mxu0 0.0
  %157 = vmatpush2.msra.mxu0 0.0
  %158 = vmatprep.subr.mxu0 0.0
  %159 = vmatpush2.msra.mxu0 0.0
  %160 = vmatprep.subr.mxu0 0.0
  %161 = vmatpush2.msra.mxu0 0.0
  %162 = vmatprep.subr.mxu0 0.0
  %163 = vmatpush2.msra.mxu0 0.0
  %164 = vmatprep.subr.mxu0 0.0
  %165 = vmatpush2.msra.mxu0 0.0
  %166 = vmatprep.subr.mxu0 0.0
  %167 = vmatpush2.msra.mxu0 0.0
  %168 = vmatprep.subr.mxu0 0.0
  %169 = vmatpush2.msra.mxu0 0.0
  %170 = vmatprep.subr.mxu0 0.0
  %171 = vmatpush2.msra.mxu0 0.0
  %172 = vmatprep.subr.mxu0 0.0
  %173 = vmatpush2.msra.mxu0 0.0
  %174 = vmatprep.subr.mxu0 0.0
  %175 = vmatpush2.msra.mxu0 0.0
  %176 = vmatprep.subr.mxu0 0.0
  %177 = vmatpush2.msra.mxu0 0.0
  %178 = vmatprep.subr.mxu0 0.0
  %179 = vmatpush2.msra.mxu0 0.0
  %180 = vmatprep.mubr.f32.mxu0 0.0
  %181 = vmatmul.mubr.f32.gmra.mxu0 %v101
  %v182 = vpop.f32.mrf.mxu0
  %v183 = vadd.f32 0.0, %v182
  %v184 = vpop.f32.mrf.mxu0
  %v185 = vadd.f32 0.0, %v184
  %186 = vdwg.mxu0
  %187 = vmatprep.subr.mxu0 0.0
  %188 = vmatpush1.msra.mxu0 0.0
  %189 = vmatprep.subr.mxu0 0.0
  %190 = vmatpush1.msra.mxu0 0.0
  %191 = vmatprep.subr.mxu0 0.0
  %192 = vmatpush1.msra.mxu0 0.0
  %193 = vmatprep.subr.mxu0 0.0
  %194 = vmatpush1.msra.mxu0 0.0
  %195 = vmatprep.subr.mxu0 0.0
  %196 = vmatpush1.msra.mxu0 0.0
  %197 = vmatprep.subr.mxu0 0.0
  %198 = vmatpush1.msra.mxu0 0.0
  %199 = vmatprep.subr.mxu0 0.0
  %200 = vmatpush1.msra.mxu0 0.0
  %201 = vmatprep.subr.mxu0 0.0
  %202 = vmatpush1.msra.mxu0 0.0
  %203 = vmatprep.subr.mxu0 0.0
  %204 = vmatpush1.msra.mxu0 0.0
  %205 = vmatprep.subr.mxu0 0.0
  %206 = vmatpush1.msra.mxu0 0.0
  %207 = vmatprep.subr.mxu0 0.0
  %208 = vmatpush1.msra.mxu0 0.0
  %209 = vmatprep.subr.mxu0 0.0
  %210 = vmatpush1.msra.mxu0 0.0
  %211 = vmatprep.subr.mxu0 0.0
  %212 = vmatpush1.msra.mxu0 0.0
  %213 = vmatprep.subr.mxu0 %v114
  %214 = vmatpush1.msra.mxu0 %v111
  %215 = vmatprep.subr.mxu0 %v94
  %216 = vmatpush1.msra.mxu0 %v93
  %217 = vmatprep.subr.mxu0 %v90
  %218 = vmatpush1.msra.mxu0 %v89
  %219 = vmatprep.subr.mxu0 0.0
  %220 = vmatpush2.msra.mxu0 0.0
  %221 = vmatprep.subr.mxu0 0.0
  %222 = vmatpush2.msra.mxu0 0.0
  %223 = vmatprep.subr.mxu0 0.0
  %224 = vmatpush2.msra.mxu0 0.0
  %225 = vmatprep.subr.mxu0 0.0
  %226 = vmatpush2.msra.mxu0 0.0
  %227 = vmatprep.subr.mxu0 0.0
  %228 = vmatpush2.msra.mxu0 0.0
  %229 = vmatprep.subr.mxu0 0.0
  %230 = vmatpush2.msra.mxu0 0.0
  %231 = vmatprep.subr.mxu0 0.0
  %232 = vmatpush2.msra.mxu0 0.0
  %233 = vmatprep.subr.mxu0 0.0
  %234 = vmatpush2.msra.mxu0 0.0
  %235 = vmatprep.subr.mxu0 0.0
  %236 = vmatpush2.msra.mxu0 0.0
  %237 = vmatprep.subr.mxu0 0.0
  %238 = vmatpush2.msra.mxu0 0.0
  %239 = vmatprep.subr.mxu0 0.0
  %240 = vmatpush2.msra.mxu0 0.0
  %241 = vmatprep.subr.mxu0 0.0
  %242 = vmatpush2.msra.mxu0 0.0
  %243 = vmatprep.subr.mxu0 0.0
  %244 = vmatpush2.msra.mxu0 0.0
  %245 = vmatprep.subr.mxu0 0.0
  %246 = vmatpush2.msra.mxu0 0.0
  %247 = vmatprep.subr.mxu0 0.0
  %248 = vmatpush2.msra.mxu0 0.0
  %249 = vmatprep.subr.mxu0 0.0
  %250 = vmatpush2.msra.mxu0 0.0
  %251 = vmatprep.mubr.f32.mxu0 0.0
  %252 = vmatmul.mubr.f32.gmra.mxu0 %v101
  %v253 = vpop.f32.mrf.mxu0
  %v254 = vadd.f32 0.0, %v253
  %v255 = vpop.f32.mrf.mxu0
  %v256 = vadd.f32 0.0, %v255
  %257 = vdwg.mxu0
  %258 = vrot.lane.b32.xlu0 %v183, 127
  %v259 = vpop.permute.xlu0 %258
  %260 = vrot.lane.b32.xlu0 %v185, 127
  %v261 = vpop.permute.xlu0 %260
  %262 = vrot.lane.b32.xlu0 %v254, 127
  %v263 = vpop.permute.xlu0 %262
  %264 = vrot.lane.b32.xlu0 %v256, 127
  %v265 = vpop.permute.xlu0 %264
  %v266 = vlaneseq
  %v267 = vand.u32 %v266, 127
  %vm268 = vcmp.lt.s32.totalorder %v267, 127
  %v269 = vsel %vm268, %v263, %v265
  %v270 = vsel %vm268, %v261, %v263
  %v271 = vsel %vm268, %v259, %v261
  %v272 = vsel %vm268, %v265, %v259
  %v273 = vmax.f32 %v183, %v271
  %v274 = vmax.f32 %v185, %v270
  %v275 = vmax.f32 %v254, %v269
  %v276 = vmax.f32 %v256, %v272
  %277 = vrot.lane.b32.xlu0 %v183, 113
  %v278 = vpop.permute.xlu0 %277
  %279 = vrot.lane.b32.xlu0 %v185, 113
  %v280 = vpop.permute.xlu0 %279
  %281 = vrot.lane.b32.xlu0 %v254, 113
  %v282 = vpop.permute.xlu0 %281
  %283 = vrot.lane.b32.xlu0 %v256, 113
  %v284 = vpop.permute.xlu0 %283
  %vm285 = vcmp.lt.s32.totalorder %v267, 113
  %v286 = vsel %vm285, %v282, %v284
  %v287 = vsel %vm285, %v280, %v282
  %v288 = vsel %vm285, %v278, %v280
  %v289 = vsel %vm285, %v284, %v278
  %v290 = vmax.f32 %v273, %v288
  %v291 = vmax.f32 %v274, %v287
  %v292 = vmax.f32 %v275, %v286
  %v293 = vmax.f32 %v276, %v289
  %294 = vrot.lane.b32.xlu0 %v183, 112
  %v295 = vpop.permute.xlu0 %294
  %296 = vrot.lane.b32.xlu0 %v185, 112
  %v297 = vpop.permute.xlu0 %296
  %298 = vrot.lane.b32.xlu0 %v254, 112
  %v299 = vpop.permute.xlu0 %298
  %300 = vrot.lane.b32.xlu0 %v256, 112
  %v301 = vpop.permute.xlu0 %300
  %vm302 = vcmp.lt.s32.totalorder %v267, 112
  %v303 = vsel %vm302, %v299, %v301
  %v304 = vsel %vm302, %v297, %v299
  %v305 = vsel %vm302, %v295, %v297
  %v306 = vsel %vm302, %v301, %v295
  %v307 = vmax.f32 %v290, %v305
  %v308 = vmax.f32 %v291, %v304
  %v309 = vmax.f32 %v292, %v303
  %v310 = vmax.f32 %v293, %v306
  %v311 = vmax.f32 %v307, 0.0
  %v312 = vmax.f32 %v308, 0.0
  %v313 = vmax.f32 %v309, 0.0
  %v314 = vmax.f32 %v310, 0.0
  %315 = vmatprep.subr.mxu0 0.0
  %316 = vmatpush1.xpose.msra.mxu0 0.0
  %317 = vmatprep.subr.mxu0 0.0
  %318 = vmatpush1.xpose.msra.mxu0 0.0
  %319 = vmatprep.subr.mxu0 0.0
  %320 = vmatpush1.xpose.msra.mxu0 0.0
  %321 = vmatprep.subr.mxu0 0.0
  %322 = vmatpush1.xpose.msra.mxu0 0.0
  %323 = vmatprep.subr.mxu0 0.0
  %324 = vmatpush1.xpose.msra.mxu0 0.0
  %325 = vmatprep.subr.mxu0 0.0
  %326 = vmatpush1.xpose.msra.mxu0 0.0
  %327 = vmatprep.subr.mxu0 0.0
  %328 = vmatpush1.xpose.msra.mxu0 0.0
  %329 = vmatprep.subr.mxu0 0.0
  %330 = vmatpush1.xpose.msra.mxu0 0.0
  %331 = vmatprep.subr.mxu0 %v84
  %332 = vmatpush1.xpose.msra.mxu0 %v83
  %333 = vmatprep.subr.mxu0 %v82
  %334 = vmatpush1.xpose.msra.mxu0 %v81
  %335 = vmatprep.subr.mxu0 %v80
  %336 = vmatpush1.xpose.msra.mxu0 %v79
  %337 = vmatprep.subr.mxu0 %v78
  %338 = vmatpush1.xpose.msra.mxu0 %v77
  %339 = vmatprep.subr.mxu0 %v76
  %340 = vmatpush1.xpose.msra.mxu0 %v75
  %341 = vmatprep.subr.mxu0 %v74
  %342 = vmatpush1.xpose.msra.mxu0 %v73
  %343 = vmatprep.subr.mxu0 %v72
  %344 = vmatpush1.xpose.msra.mxu0 %v71
  %345 = vmatprep.subr.mxu0 %v70
  %346 = vmatpush1.xpose.msra.mxu0 %v69
  %347 = vmatprep.subr.mxu0 0.0
  %348 = vmatpush2.xpose.msra.mxu0 0.0
  %349 = vmatprep.subr.mxu0 0.0
  %350 = vmatpush2.xpose.msra.mxu0 0.0
  %351 = vmatprep.subr.mxu0 0.0
  %352 = vmatpush2.xpose.msra.mxu0 0.0
  %353 = vmatprep.subr.mxu0 0.0
  %354 = vmatpush2.xpose.msra.mxu0 0.0
  %355 = vmatprep.subr.mxu0 0.0
  %356 = vmatpush2.xpose.msra.mxu0 0.0
  %357 = vmatprep.subr.mxu0 0.0
  %358 = vmatpush2.xpose.msra.mxu0 0.0
  %359 = vmatprep.subr.mxu0 0.0
  %360 = vmatpush2.xpose.msra.mxu0 0.0
  %361 = vmatprep.subr.mxu0 0.0
  %362 = vmatpush2.xpose.msra.mxu0 0.0
  %363 = vmatprep.subr.mxu0 0.0
  %364 = vmatpush2.xpose.msra.mxu0 0.0
  %365 = vmatprep.subr.mxu0 0.0
  %366 = vmatpush2.xpose.msra.mxu0 0.0
  %367 = vmatprep.subr.mxu0 0.0
  %368 = vmatpush2.xpose.msra.mxu0 0.0
  %369 = vmatprep.subr.mxu0 0.0
  %370 = vmatpush2.xpose.msra.mxu0 0.0
  %371 = vmatprep.subr.mxu0 0.0
  %372 = vmatpush2.xpose.msra.mxu0 0.0
  %373 = vmatprep.subr.mxu0 0.0
  %374 = vmatpush2.xpose.msra.mxu0 0.0
  %375 = vmatprep.subr.mxu0 0.0
  %376 = vmatpush2.xpose.msra.mxu0 0.0
  %377 = vmatprep.subr.mxu0 0.0
  %378 = vmatpush2.xpose.msra.mxu0 0.0
  %379 = vmatprep.mubr.f32.mxu0 %v312
  %380 = vmatmul.mubr.f32.gmra.mxu0 %v311
  %v381 = vpop.f32.mrf.mxu0
  %v382 = vadd.f32 0.0, %v381
  %v383 = vpop.f32.mrf.mxu0
  %384 = vdwg.mxu0
  %v385 = vmul.f32 %v382, %v85
  %vm386 = vcmask 523264
  %v387 = vsel %vm386, %v385, 0.0
  %v388 = vrot.slane %v387, 4
  %v389 = vadd.f32 %v387, %v388
  %v390 = vrot.slane %v389, 2
  %v391 = vadd.f32 %v389, %v390
  %v392 = vrot.slane %v391, 1
  %v393 = vadd.f32 %v391, %v392
  %394 = vmatprep.subr.mxu0 0.0
  %395 = vmatpush1.xpose.msra.mxu0 0.0
  %396 = vmatprep.subr.mxu0 0.0
  %397 = vmatpush1.xpose.msra.mxu0 0.0
  %398 = vmatprep.subr.mxu0 0.0
  %399 = vmatpush1.xpose.msra.mxu0 0.0
  %400 = vmatprep.subr.mxu0 0.0
  %401 = vmatpush1.xpose.msra.mxu0 0.0
  %402 = vmatprep.subr.mxu0 0.0
  %403 = vmatpush1.xpose.msra.mxu0 0.0
  %404 = vmatprep.subr.mxu0 0.0
  %405 = vmatpush1.xpose.msra.mxu0 0.0
  %406 = vmatprep.subr.mxu0 0.0
  %407 = vmatpush1.xpose.msra.mxu0 0.0
  %408 = vmatprep.subr.mxu0 0.0
  %409 = vmatpush1.xpose.msra.mxu0 0.0
  %410 = vmatprep.subr.mxu0 %v84
  %411 = vmatpush1.xpose.msra.mxu0 %v83
  %412 = vmatprep.subr.mxu0 %v82
  %413 = vmatpush1.xpose.msra.mxu0 %v81
  %414 = vmatprep.subr.mxu0 %v80
  %415 = vmatpush1.xpose.msra.mxu0 %v79
  %416 = vmatprep.subr.mxu0 %v78
  %417 = vmatpush1.xpose.msra.mxu0 %v77
  %418 = vmatprep.subr.mxu0 %v76
  %419 = vmatpush1.xpose.msra.mxu0 %v75
  %420 = vmatprep.subr.mxu0 %v74
  %421 = vmatpush1.xpose.msra.mxu0 %v73
  %422 = vmatprep.subr.mxu0 %v72
  %423 = vmatpush1.xpose.msra.mxu0 %v71
  %424 = vmatprep.subr.mxu0 %v70
  %425 = vmatpush1.xpose.msra.mxu0 %v69
  %426 = vmatprep.subr.mxu0 0.0
  %427 = vmatpush2.xpose.msra.mxu0 0.0
  %428 = vmatprep.subr.mxu0 0.0
  %429 = vmatpush2.xpose.msra.mxu0 0.0
  %430 = vmatprep.subr.mxu0 0.0
  %431 = vmatpush2.xpose.msra.mxu0 0.0
  %432 = vmatprep.subr.mxu0 0.0
  %433 = vmatpush2.xpose.msra.mxu0 0.0
  %434 = vmatprep.subr.mxu0 0.0
  %435 = vmatpush2.xpose.msra.mxu0 0.0
  %436 = vmatprep.subr.mxu0 0.0
  %437 = vmatpush2.xpose.msra.mxu0 0.0
  %438 = vmatprep.subr.mxu0 0.0
  %439 = vmatpush2.xpose.msra.mxu0 0.0
  %440 = vmatprep.subr.mxu0 0.0
  %441 = vmatpush2.xpose.msra.mxu0 0.0
  %442 = vmatprep.subr.mxu0 0.0
  %443 = vmatpush2.xpose.msra.mxu0 0.0
  %444 = vmatprep.subr.mxu0 0.0
  %445 = vmatpush2.xpose.msra.mxu0 0.0
  %446 = vmatprep.subr.mxu0 0.0
  %447 = vmatpush2.xpose.msra.mxu0 0.0
  %448 = vmatprep.subr.mxu0 0.0
  %449 = vmatpush2.xpose.msra.mxu0 0.0
  %450 = vmatprep.subr.mxu0 0.0
  %451 = vmatpush2.xpose.msra.mxu0 0.0
  %452 = vmatprep.subr.mxu0 0.0
  %453 = vmatpush2.xpose.msra.mxu0 0.0
  %454 = vmatprep.subr.mxu0 0.0
  %455 = vmatpush2.xpose.msra.mxu0 0.0
  %456 = vmatprep.subr.mxu0 0.0
  %457 = vmatpush2.xpose.msra.mxu0 0.0
  %458 = vmatprep.mubr.f32.mxu0 %v314
  %459 = vmatmul.mubr.f32.gmra.mxu0 %v313
  %v460 = vpop.f32.mrf.mxu0
  %v461 = vadd.f32 0.0, %v460
  %v462 = vpop.f32.mrf.mxu0
  %463 = vdwg.mxu0
  %v464 = vmul.f32 %v461, %v85
  %v465 = vsel %vm386, %v464, 0.0
  %v466 = vrot.slane %v465, 4
  %v467 = vadd.f32 %v465, %v466
  %v468 = vrot.slane %v467, 2
  %v469 = vadd.f32 %v467, %v468
  %v470 = vrot.slane %v469, 1
  %v471 = vadd.f32 %v469, %v470
  %v472 = vsel %vm103, %v393, %v471
  %v473 = vld [vmem:[%s1] sm:$0x3]
  %vm474 = vcmask 64512
  %v476 = vsel %vm474, %v473, 0
  %478 = vmatprep.subr.mxu0 0.0
  %479 = vmatpush1.msra.mxu0 0.0
  %480 = vmatprep.subr.mxu0 0.0
  %481 = vmatpush1.msra.mxu0 0.0
  %482 = vmatprep.subr.mxu0 0.0
  %483 = vmatpush1.msra.mxu0 0.0
  %484 = vmatprep.subr.mxu0 0.0
  %485 = vmatpush1.msra.mxu0 0.0
  %486 = vmatprep.subr.mxu0 0.0
  %487 = vmatpush1.msra.mxu0 0.0
  %488 = vmatprep.subr.mxu0 0.0
  %489 = vmatpush1.msra.mxu0 0.0
  %490 = vmatprep.subr.mxu0 0.0
  %491 = vmatpush1.msra.mxu0 0.0
  %492 = vmatprep.subr.mxu0 0.0
  %493 = vmatpush1.msra.mxu0 0.0
  %494 = vmatprep.subr.mxu0 0.0
  %495 = vmatpush1.msra.mxu0 0.0
  %496 = vmatprep.subr.mxu0 0.0
  %497 = vmatpush1.msra.mxu0 0.0
  %498 = vmatprep.subr.mxu0 0.0
  %499 = vmatpush1.msra.mxu0 0.0
  %500 = vmatprep.subr.mxu0 0.0
  %501 = vmatpush1.msra.mxu0 0.0
  %502 = vmatprep.subr.mxu0 0.0
  %503 = vmatpush1.msra.mxu0 0.0
  %504 = vmatprep.subr.mxu0 0.0
  %505 = vmatpush1.msra.mxu0 0.0
  %506 = vmatprep.subr.mxu0 0.0
  %507 = vmatpush1.msra.mxu0 0.0
  %508 = vmatprep.subr.mxu0 0.0
  %509 = vmatpush1.msra.mxu0 %v18
  %510 = vmatprep.subr.mxu0 0.0
  %511 = vmatpush2.msra.mxu0 0.0
  %512 = vmatprep.subr.mxu0 0.0
  %513 = vmatpush2.msra.mxu0 0.0
  %514 = vmatprep.subr.mxu0 0.0
  %515 = vmatpush2.msra.mxu0 0.0
  %516 = vmatprep.subr.mxu0 0.0
  %517 = vmatpush2.msra.mxu0 0.0
  %518 = vmatprep.subr.mxu0 0.0
  %519 = vmatpush2.msra.mxu0 0.0
  %520 = vmatprep.subr.mxu0 0.0
  %521 = vmatpush2.msra.mxu0 0.0
  %522 = vmatprep.subr.mxu0 0.0
  %523 = vmatpush2.msra.mxu0 0.0
  %524 = vmatprep.subr.mxu0 0.0
  %525 = vmatpush2.msra.mxu0 0.0
  %526 = vmatprep.subr.mxu0 0.0
  %527 = vmatpush2.msra.mxu0 0.0
  %528 = vmatprep.subr.mxu0 0.0
  %529 = vmatpush2.msra.mxu0 0.0
  %530 = vmatprep.subr.mxu0 0.0
  %531 = vmatpush2.msra.mxu0 0.0
  %532 = vmatprep.subr.mxu0 0.0
  %533 = vmatpush2.msra.mxu0 0.0
  %534 = vmatprep.subr.mxu0 0.0
  %535 = vmatpush2.msra.mxu0 0.0
  %536 = vmatprep.subr.mxu0 0.0
  %537 = vmatpush2.msra.mxu0 0.0
  %538 = vmatprep.subr.mxu0 0.0
  %539 = vmatpush2.msra.mxu0 0.0
  %540 = vmatprep.subr.mxu0 0.0
  %541 = vmatpush2.msra.mxu0 0.0
  %542 = vmatprep.mubr.f32.mxu0 0.0
  %543 = vmatmul.mubr.f32.gmra.mxu0 %v476
  %v544 = vpop.f32.mrf.mxu0
  %v545 = vadd.f32 %v19, %v544
  %v546 = vpop.f32.mrf.mxu0
  %547 = vdwg.mxu0
  %v548 = vmax.f32 %v545, 0.0
  %v550 = vsel %vm386, %v548, 0
  %552 = vmatprep.subr.mxu0 0.0
  %553 = vmatpush1.msra.mxu0 0.0
  %554 = vmatprep.subr.mxu0 0.0
  %555 = vmatpush1.msra.mxu0 0.0
  %556 = vmatprep.subr.mxu0 0.0
  %557 = vmatpush1.msra.mxu0 0.0
  %558 = vmatprep.subr.mxu0 0.0
  %559 = vmatpush1.msra.mxu0 0.0
  %560 = vmatprep.subr.mxu0 0.0
  %561 = vmatpush1.msra.mxu0 0.0
  %562 = vmatprep.subr.mxu0 0.0
  %563 = vmatpush1.msra.mxu0 0.0
  %564 = vmatprep.subr.mxu0 0.0
  %565 = vmatpush1.msra.mxu0 0.0
  %566 = vmatprep.subr.mxu0 0.0
  %567 = vmatpush1.msra.mxu0 0.0
  %568 = vmatprep.subr.mxu0 0.0
  %569 = vmatpush1.msra.mxu0 %v27
  %570 = vmatprep.subr.mxu0 0.0
  %571 = vmatpush1.msra.mxu0 %v26
  %572 = vmatprep.subr.mxu0 0.0
  %573 = vmatpush1.msra.mxu0 %v25
  %574 = vmatprep.subr.mxu0 0.0
  %575 = vmatpush1.msra.mxu0 %v24
  %576 = vmatprep.subr.mxu0 0.0
  %577 = vmatpush1.msra.mxu0 %v23
  %578 = vmatprep.subr.mxu0 0.0
  %579 = vmatpush1.msra.mxu0 %v22
  %580 = vmatprep.subr.mxu0 0.0
  %581 = vmatpush1.msra.mxu0 %v21
  %582 = vmatprep.subr.mxu0 0.0
  %583 = vmatpush1.msra.mxu0 %v20
  %584 = vmatprep.subr.mxu0 0.0
  %585 = vmatpush2.msra.mxu0 0.0
  %586 = vmatprep.subr.mxu0 0.0
  %587 = vmatpush2.msra.mxu0 0.0
  %588 = vmatprep.subr.mxu0 0.0
  %589 = vmatpush2.msra.mxu0 0.0
  %590 = vmatprep.subr.mxu0 0.0
  %591 = vmatpush2.msra.mxu0 0.0
  %592 = vmatprep.subr.mxu0 0.0
  %593 = vmatpush2.msra.mxu0 0.0
  %594 = vmatprep.subr.mxu0 0.0
  %595 = vmatpush2.msra.mxu0 0.0
  %596 = vmatprep.subr.mxu0 0.0
  %597 = vmatpush2.msra.mxu0 0.0
  %598 = vmatprep.subr.mxu0 0.0
  %599 = vmatpush2.msra.mxu0 0.0
  %600 = vmatprep.subr.mxu0 0.0
  %601 = vmatpush2.msra.mxu0 0.0
  %602 = vmatprep.subr.mxu0 0.0
  %603 = vmatpush2.msra.mxu0 0.0
  %604 = vmatprep.subr.mxu0 0.0
  %605 = vmatpush2.msra.mxu0 0.0
  %606 = vmatprep.subr.mxu0 0.0
  %607 = vmatpush2.msra.mxu0 0.0
  %608 = vmatprep.subr.mxu0 0.0
  %609 = vmatpush2.msra.mxu0 0.0
  %610 = vmatprep.subr.mxu0 0.0
  %611 = vmatpush2.msra.mxu0 0.0
  %612 = vmatprep.subr.mxu0 0.0
  %613 = vmatpush2.msra.mxu0 0.0
  %614 = vmatprep.subr.mxu0 0.0
  %615 = vmatpush2.msra.mxu0 0.0
  %616 = vmatprep.mubr.f32.mxu0 0.0
  %617 = vmatmul.mubr.f32.gmra.mxu0 %v550
  %v618 = vpop.f32.mrf.mxu0
  %v619 = vadd.f32 %v28, %v618
  %v620 = vpop.f32.mrf.mxu0
  %621 = vdwg.mxu0
  %v622 = vmax.f32 %v619, 0.0
  %v624 = vlaneseq
  %v625 = vshrl.u32 %v624, 7
  %v626 = vsub.s32 0, %v625
  %v627 = vrot.slane %v62, %v626
  %v628 = vlaneseq
  %v629 = vshrl.u32 %v628, 7
  %v630 = vsub.s32 1, %v629
  %v631 = vrot.slane %v62, %v630
  %634 = vmatprep.subr.mxu0 %v60
  %635 = vmatpush1.msra.mxu0 %v59
  %636 = vmatprep.subr.mxu0 %v58
  %637 = vmatpush1.msra.mxu0 %v57
  %638 = vmatprep.subr.mxu0 %v56
  %639 = vmatpush1.msra.mxu0 %v55
  %640 = vmatprep.subr.mxu0 %v54
  %641 = vmatpush1.msra.mxu0 %v53
  %642 = vmatprep.subr.mxu0 %v52
  %643 = vmatpush1.msra.mxu0 %v51
  %644 = vmatprep.subr.mxu0 %v50
  %645 = vmatpush1.msra.mxu0 %v49
  %646 = vmatprep.subr.mxu0 %v48
  %647 = vmatpush1.msra.mxu0 %v47
  %648 = vmatprep.subr.mxu0 %v46
  %649 = vmatpush1.msra.mxu0 %v45
  %650 = vmatprep.subr.mxu0 %v44
  %651 = vmatpush1.msra.mxu0 %v43
  %652 = vmatprep.subr.mxu0 %v42
  %653 = vmatpush1.msra.mxu0 %v41
  %654 = vmatprep.subr.mxu0 %v40
  %655 = vmatpush1.msra.mxu0 %v39
  %656 = vmatprep.subr.mxu0 %v38
  %657 = vmatpush1.msra.mxu0 %v37
  %658 = vmatprep.subr.mxu0 %v36
  %659 = vmatpush1.msra.mxu0 %v35
  %660 = vmatprep.subr.mxu0 %v34
  %661 = vmatpush1.msra.mxu0 %v33
  %662 = vmatprep.subr.mxu0 %v32
  %663 = vmatpush1.msra.mxu0 %v31
  %664 = vmatprep.subr.mxu0 %v30
  %665 = vmatpush1.msra.mxu0 %v29
  %666 = vmatprep.subr.mxu0 0.0
  %667 = vmatpush2.msra.mxu0 0.0
  %668 = vmatprep.subr.mxu0 0.0
  %669 = vmatpush2.msra.mxu0 0.0
  %670 = vmatprep.subr.mxu0 0.0
  %671 = vmatpush2.msra.mxu0 0.0
  %672 = vmatprep.subr.mxu0 0.0
  %673 = vmatpush2.msra.mxu0 0.0
  %674 = vmatprep.subr.mxu0 0.0
  %675 = vmatpush2.msra.mxu0 0.0
  %676 = vmatprep.subr.mxu0 0.0
  %677 = vmatpush2.msra.mxu0 0.0
  %678 = vmatprep.subr.mxu0 0.0
  %679 = vmatpush2.msra.mxu0 0.0
  %680 = vmatprep.subr.mxu0 0.0
  %681 = vmatpush2.msra.mxu0 0.0
  %682 = vmatprep.subr.mxu0 0.0
  %683 = vmatpush2.msra.mxu0 0.0
  %684 = vmatprep.subr.mxu0 0.0
  %685 = vmatpush2.msra.mxu0 0.0
  %686 = vmatprep.subr.mxu0 0.0
  %687 = vmatpush2.msra.mxu0 0.0
  %688 = vmatprep.subr.mxu0 0.0
  %689 = vmatpush2.msra.mxu0 0.0
  %690 = vmatprep.subr.mxu0 0.0
  %691 = vmatpush2.msra.mxu0 0.0
  %692 = vmatprep.subr.mxu0 0.0
  %693 = vmatpush2.msra.mxu0 0.0
  %694 = vmatprep.subr.mxu0 0.0
  %695 = vmatpush2.msra.mxu0 0.0
  %696 = vmatprep.subr.mxu0 0.0
  %697 = vmatpush2.msra.mxu0 0.0
  %698 = vmatprep.mubr.f32.mxu0 0.0
  %699 = vmatmul.mubr.f32.gmra.mxu0 %v622
  %v700 = vpop.f32.mrf.mxu0
  %v701 = vadd.f32 %v627, %v700
  %v702 = vpop.f32.mrf.mxu0
  %v703 = vadd.f32 %v631, %v702
  %704 = vdwg.mxu0
  %v705 = vmax.f32 %v701, 0.0
  %v706 = vmax.f32 %v703, 0.0
  %v707 = vld [vmem:[%s2] sm:$0x3]
  %vm708 = vcmask 31744
  %v710 = vsel %vm708, %v707, 0
  %vm712 = vcmask 1043456
  %v714 = vsel %vm712, %v63, 0
  %716 = vmatprep.subr.mxu0 0.0
  %717 = vmatpush1.msra.mxu0 0.0
  %718 = vmatprep.subr.mxu0 0.0
  %719 = vmatpush1.msra.mxu0 0.0
  %720 = vmatprep.subr.mxu0 0.0
  %721 = vmatpush1.msra.mxu0 0.0
  %722 = vmatprep.subr.mxu0 0.0
  %723 = vmatpush1.msra.mxu0 0.0
  %724 = vmatprep.subr.mxu0 0.0
  %725 = vmatpush1.msra.mxu0 0.0
  %726 = vmatprep.subr.mxu0 0.0
  %727 = vmatpush1.msra.mxu0 0.0
  %728 = vmatprep.subr.mxu0 0.0
  %729 = vmatpush1.msra.mxu0 0.0
  %730 = vmatprep.subr.mxu0 0.0
  %731 = vmatpush1.msra.mxu0 0.0
  %732 = vmatprep.subr.mxu0 0.0
  %733 = vmatpush1.msra.mxu0 0.0
  %734 = vmatprep.subr.mxu0 0.0
  %735 = vmatpush1.msra.mxu0 0.0
  %736 = vmatprep.subr.mxu0 0.0
  %737 = vmatpush1.msra.mxu0 0.0
  %738 = vmatprep.subr.mxu0 0.0
  %739 = vmatpush1.msra.mxu0 0.0
  %740 = vmatprep.subr.mxu0 0.0
  %741 = vmatpush1.msra.mxu0 0.0
  %742 = vmatprep.subr.mxu0 0.0
  %743 = vmatpush1.msra.mxu0 0.0
  %744 = vmatprep.subr.mxu0 0.0
  %745 = vmatpush1.msra.mxu0 0.0
  %746 = vmatprep.subr.mxu0 0.0
  %747 = vmatpush1.msra.mxu0 %v714
  %748 = vmatprep.subr.mxu0 0.0
  %749 = vmatpush2.msra.mxu0 0.0
  %750 = vmatprep.subr.mxu0 0.0
  %751 = vmatpush2.msra.mxu0 0.0
  %752 = vmatprep.subr.mxu0 0.0
  %753 = vmatpush2.msra.mxu0 0.0
  %754 = vmatprep.subr.mxu0 0.0
  %755 = vmatpush2.msra.mxu0 0.0
  %756 = vmatprep.subr.mxu0 0.0
  %757 = vmatpush2.msra.mxu0 0.0
  %758 = vmatprep.subr.mxu0 0.0
  %759 = vmatpush2.msra.mxu0 0.0
  %760 = vmatprep.subr.mxu0 0.0
  %761 = vmatpush2.msra.mxu0 0.0
  %762 = vmatprep.subr.mxu0 0.0
  %763 = vmatpush2.msra.mxu0 0.0
  %764 = vmatprep.subr.mxu0 0.0
  %765 = vmatpush2.msra.mxu0 0.0
  %766 = vmatprep.subr.mxu0 0.0
  %767 = vmatpush2.msra.mxu0 0.0
  %768 = vmatprep.subr.mxu0 0.0
  %769 = vmatpush2.msra.mxu0 0.0
  %770 = vmatprep.subr.mxu0 0.0
  %771 = vmatpush2.msra.mxu0 0.0
  %772 = vmatprep.subr.mxu0 0.0
  %773 = vmatpush2.msra.mxu0 0.0
  %774 = vmatprep.subr.mxu0 0.0
  %775 = vmatpush2.msra.mxu0 0.0
  %776 = vmatprep.subr.mxu0 0.0
  %777 = vmatpush2.msra.mxu0 0.0
  %778 = vmatprep.subr.mxu0 0.0
  %779 = vmatpush2.msra.mxu0 0.0
  %780 = vmatprep.mubr.f32.mxu0 0.0
  %781 = vmatmul.mubr.f32.gmra.mxu0 %v710
  %v782 = vpop.f32.mrf.mxu0
  %v783 = vadd.f32 %v64, %v782
  %v784 = vpop.f32.mrf.mxu0
  %785 = vdwg.mxu0
  %v786 = vmax.f32 %v783, 0.0
  %787 = vmatprep.subr.mxu0 0.0
  %788 = vmatpush1.xpose.msra.mxu0 0.0
  %789 = vmatprep.subr.mxu0 0.0
  %790 = vmatpush1.xpose.msra.mxu0 0.0
  %791 = vmatprep.subr.mxu0 0.0
  %792 = vmatpush1.xpose.msra.mxu0 0.0
  %793 = vmatprep.subr.mxu0 0.0
  %794 = vmatpush1.xpose.msra.mxu0 0.0
  %795 = vmatprep.subr.mxu0 0.0
  %796 = vmatpush1.xpose.msra.mxu0 0.0
  %797 = vmatprep.subr.mxu0 0.0
  %798 = vmatpush1.xpose.msra.mxu0 0.0
  %799 = vmatprep.subr.mxu0 0.0
  %800 = vmatpush1.xpose.msra.mxu0 0.0
  %801 = vmatprep.subr.mxu0 0.0
  %802 = vmatpush1.xpose.msra.mxu0 0.0
  %803 = vmatprep.subr.mxu0 0.0
  %804 = vmatpush1.xpose.msra.mxu0 0.0
  %805 = vmatprep.subr.mxu0 0.0
  %806 = vmatpush1.xpose.msra.mxu0 0.0
  %807 = vmatprep.subr.mxu0 0.0
  %808 = vmatpush1.xpose.msra.mxu0 0.0
  %809 = vmatprep.subr.mxu0 0.0
  %810 = vmatpush1.xpose.msra.mxu0 0.0
  %811 = vmatprep.subr.mxu0 0.0
  %812 = vmatpush1.xpose.msra.mxu0 0.0
  %813 = vmatprep.subr.mxu0 0.0
  %814 = vmatpush1.xpose.msra.mxu0 0.0
  %815 = vmatprep.subr.mxu0 0.0
  %816 = vmatpush1.xpose.msra.mxu0 0.0
  %817 = vmatprep.subr.mxu0 %v66
  %818 = vmatpush1.xpose.msra.mxu0 %v65
  %819 = vmatprep.subr.mxu0 0.0
  %820 = vmatpush2.xpose.msra.mxu0 0.0
  %821 = vmatprep.subr.mxu0 0.0
  %822 = vmatpush2.xpose.msra.mxu0 0.0
  %823 = vmatprep.subr.mxu0 0.0
  %824 = vmatpush2.xpose.msra.mxu0 0.0
  %825 = vmatprep.subr.mxu0 0.0
  %826 = vmatpush2.xpose.msra.mxu0 0.0
  %827 = vmatprep.subr.mxu0 0.0
  %828 = vmatpush2.xpose.msra.mxu0 0.0
  %829 = vmatprep.subr.mxu0 0.0
  %830 = vmatpush2.xpose.msra.mxu0 0.0
  %831 = vmatprep.subr.mxu0 0.0
  %832 = vmatpush2.xpose.msra.mxu0 0.0
  %833 = vmatprep.subr.mxu0 0.0
  %834 = vmatpush2.xpose.msra.mxu0 0.0
  %835 = vmatprep.subr.mxu0 0.0
  %836 = vmatpush2.xpose.msra.mxu0 0.0
  %837 = vmatprep.subr.mxu0 0.0
  %838 = vmatpush2.xpose.msra.mxu0 0.0
  %839 = vmatprep.subr.mxu0 0.0
  %840 = vmatpush2.xpose.msra.mxu0 0.0
  %841 = vmatprep.subr.mxu0 0.0
  %842 = vmatpush2.xpose.msra.mxu0 0.0
  %843 = vmatprep.subr.mxu0 0.0
  %844 = vmatpush2.xpose.msra.mxu0 0.0
  %845 = vmatprep.subr.mxu0 0.0
  %846 = vmatpush2.xpose.msra.mxu0 0.0
  %847 = vmatprep.subr.mxu0 0.0
  %848 = vmatpush2.xpose.msra.mxu0 0.0
  %849 = vmatprep.subr.mxu0 0.0
  %850 = vmatpush2.xpose.msra.mxu0 0.0
  %851 = vmatprep.mubr.f32.mxu0 %v706
  %852 = vmatmul.mubr.f32.gmra.mxu0 %v705
  %v853 = vpop.f32.mrf.mxu0
  %v854 = vadd.f32 0.0, %v853
  %v855 = vpop.f32.mrf.mxu0
  %856 = vdwg.mxu0
  %v858 = vsel %vm386, %v472, 0
  %v861 = vsel %vm386, %v86, 0
  %863 = vmatprep.subr.mxu0 0.0
  %864 = vmatpush1.xpose.msra.mxu0 0.0
  %865 = vmatprep.subr.mxu0 0.0
  %866 = vmatpush1.xpose.msra.mxu0 0.0
  %867 = vmatprep.subr.mxu0 0.0
  %868 = vmatpush1.xpose.msra.mxu0 0.0
  %869 = vmatprep.subr.mxu0 0.0
  %870 = vmatpush1.xpose.msra.mxu0 0.0
  %871 = vmatprep.subr.mxu0 0.0
  %872 = vmatpush1.xpose.msra.mxu0 0.0
  %873 = vmatprep.subr.mxu0 0.0
  %874 = vmatpush1.xpose.msra.mxu0 0.0
  %875 = vmatprep.subr.mxu0 0.0
  %876 = vmatpush1.xpose.msra.mxu0 0.0
  %877 = vmatprep.subr.mxu0 0.0
  %878 = vmatpush1.xpose.msra.mxu0 0.0
  %879 = vmatprep.subr.mxu0 0.0
  %880 = vmatpush1.xpose.msra.mxu0 0.0
  %881 = vmatprep.subr.mxu0 0.0
  %882 = vmatpush1.xpose.msra.mxu0 0.0
  %883 = vmatprep.subr.mxu0 0.0
  %884 = vmatpush1.xpose.msra.mxu0 0.0
  %885 = vmatprep.subr.mxu0 0.0
  %886 = vmatpush1.xpose.msra.mxu0 0.0
  %887 = vmatprep.subr.mxu0 0.0
  %888 = vmatpush1.xpose.msra.mxu0 0.0
  %889 = vmatprep.subr.mxu0 0.0
  %890 = vmatpush1.xpose.msra.mxu0 0.0
  %891 = vmatprep.subr.mxu0 0.0
  %892 = vmatpush1.xpose.msra.mxu0 0.0
  %893 = vmatprep.subr.mxu0 0.0
  %894 = vmatpush1.xpose.msra.mxu0 %v861
  %895 = vmatprep.subr.mxu0 0.0
  %896 = vmatpush2.xpose.msra.mxu0 0.0
  %897 = vmatprep.subr.mxu0 0.0
  %898 = vmatpush2.xpose.msra.mxu0 0.0
  %899 = vmatprep.subr.mxu0 0.0
  %900 = vmatpush2.xpose.msra.mxu0 0.0
  %901 = vmatprep.subr.mxu0 0.0
  %902 = vmatpush2.xpose.msra.mxu0 0.0
  %903 = vmatprep.subr.mxu0 0.0
  %904 = vmatpush2.xpose.msra.mxu0 0.0
  %905 = vmatprep.subr.mxu0 0.0
  %906 = vmatpush2.xpose.msra.mxu0 0.0
  %907 = vmatprep.subr.mxu0 0.0
  %908 = vmatpush2.xpose.msra.mxu0 0.0
  %909 = vmatprep.subr.mxu0 0.0
  %910 = vmatpush2.xpose.msra.mxu0 0.0
  %911 = vmatprep.subr.mxu0 0.0
  %912 = vmatpush2.xpose.msra.mxu0 0.0
  %913 = vmatprep.subr.mxu0 0.0
  %914 = vmatpush2.xpose.msra.mxu0 0.0
  %915 = vmatprep.subr.mxu0 0.0
  %916 = vmatpush2.xpose.msra.mxu0 0.0
  %917 = vmatprep.subr.mxu0 0.0
  %918 = vmatpush2.xpose.msra.mxu0 0.0
  %919 = vmatprep.subr.mxu0 0.0
  %920 = vmatpush2.xpose.msra.mxu0 0.0
  %921 = vmatprep.subr.mxu0 0.0
  %922 = vmatpush2.xpose.msra.mxu0 0.0
  %923 = vmatprep.subr.mxu0 0.0
  %924 = vmatpush2.xpose.msra.mxu0 0.0
  %925 = vmatprep.subr.mxu0 0.0
  %926 = vmatpush2.xpose.msra.mxu0 0.0
  %927 = vmatprep.mubr.f32.mxu0 0.0
  %928 = vmatmul.mubr.f32.gmra.mxu0 %v858
  %v929 = vpop.f32.mrf.mxu0
  %v930 = vadd.f32 %v854, %v929
  %v931 = vpop.f32.mrf.mxu0
  %932 = vdwg.mxu0
  %v934 = vsel %vm708, %v786, 0
  %v937 = vsel %vm712, %v67, 0
  %939 = vmatprep.subr.mxu0 0.0
  %940 = vmatpush1.msra.mxu0 0.0
  %941 = vmatprep.subr.mxu0 0.0
  %942 = vmatpush1.msra.mxu0 0.0
  %943 = vmatprep.subr.mxu0 0.0
  %944 = vmatpush1.msra.mxu0 0.0
  %945 = vmatprep.subr.mxu0 0.0
  %946 = vmatpush1.msra.mxu0 0.0
  %947 = vmatprep.subr.mxu0 0.0
  %948 = vmatpush1.msra.mxu0 0.0
  %949 = vmatprep.subr.mxu0 0.0
  %950 = vmatpush1.msra.mxu0 0.0
  %951 = vmatprep.subr.mxu0 0.0
  %952 = vmatpush1.msra.mxu0 0.0
  %953 = vmatprep.subr.mxu0 0.0
  %954 = vmatpush1.msra.mxu0 0.0
  %955 = vmatprep.subr.mxu0 0.0
  %956 = vmatpush1.msra.mxu0 0.0
  %957 = vmatprep.subr.mxu0 0.0
  %958 = vmatpush1.msra.mxu0 0.0
  %959 = vmatprep.subr.mxu0 0.0
  %960 = vmatpush1.msra.mxu0 0.0
  %961 = vmatprep.subr.mxu0 0.0
  %962 = vmatpush1.msra.mxu0 0.0
  %963 = vmatprep.subr.mxu0 0.0
  %964 = vmatpush1.msra.mxu0 0.0
  %965 = vmatprep.subr.mxu0 0.0
  %966 = vmatpush1.msra.mxu0 0.0
  %967 = vmatprep.subr.mxu0 0.0
  %968 = vmatpush1.msra.mxu0 0.0
  %969 = vmatprep.subr.mxu0 0.0
  %970 = vmatpush1.msra.mxu0 %v937
  %971 = vmatprep.subr.mxu0 0.0
  %972 = vmatpush2.msra.mxu0 0.0
  %973 = vmatprep.subr.mxu0 0.0
  %974 = vmatpush2.msra.mxu0 0.0
  %975 = vmatprep.subr.mxu0 0.0
  %976 = vmatpush2.msra.mxu0 0.0
  %977 = vmatprep.subr.mxu0 0.0
  %978 = vmatpush2.msra.mxu0 0.0
  %979 = vmatprep.subr.mxu0 0.0
  %980 = vmatpush2.msra.mxu0 0.0
  %981 = vmatprep.subr.mxu0 0.0
  %982 = vmatpush2.msra.mxu0 0.0
  %983 = vmatprep.subr.mxu0 0.0
  %984 = vmatpush2.msra.mxu0 0.0
  %985 = vmatprep.subr.mxu0 0.0
  %986 = vmatpush2.msra.mxu0 0.0
  %987 = vmatprep.subr.mxu0 0.0
  %988 = vmatpush2.msra.mxu0 0.0
  %989 = vmatprep.subr.mxu0 0.0
  %990 = vmatpush2.msra.mxu0 0.0
  %991 = vmatprep.subr.mxu0 0.0
  %992 = vmatpush2.msra.mxu0 0.0
  %993 = vmatprep.subr.mxu0 0.0
  %994 = vmatpush2.msra.mxu0 0.0
  %995 = vmatprep.subr.mxu0 0.0
  %996 = vmatpush2.msra.mxu0 0.0
  %997 = vmatprep.subr.mxu0 0.0
  %998 = vmatpush2.msra.mxu0 0.0
  %999 = vmatprep.subr.mxu0 0.0
  %1000 = vmatpush2.msra.mxu0 0.0
  %1001 = vmatprep.subr.mxu0 0.0
  %1002 = vmatpush2.msra.mxu0 0.0
  %1003 = vmatprep.mubr.f32.mxu0 0.0
  %1004 = vmatmul.mubr.f32.gmra.mxu0 %v934
  %v1005 = vpop.f32.mrf.mxu0
  %v1006 = vadd.f32 0.0, %v1005
  %v1007 = vpop.f32.mrf.mxu0
  %1008 = vdwg.mxu0
  %v1009 = vadd.f32 %v930, %v1006
  %v1010 = vadd.f32 %v1009, %v68
  %vm1011 = vcmp.lt.s32.totalorder %v267, 4
  %v1012 = vtanh.pop %v1010
  %v1013 = vmul.f32 %v1012, 2.0
  %v1014 = vsel %vm1011, %v1013, %v1010
  %vm1015 = vcmask 58368
  %1016 = vst.msk [vmem:[%s4] sm:$0x3] %vm1015, %v1014
  // Predicated region
  $region18: #{actor_critic_forward.1} parent=0 // pred_check
    _
  $region19: #{actor_critic_forward.1} parent=0 // pred_check_branch
    %1018 = sbr.rel (0) target = $region21
  $region20: #{actor_critic_forward.1} parent=0 // pred_region
    _
  $region21: #{actor_critic_forward.1} parent=0 // pred_fallthru
    _
  // Predicated region
  $region22: #{actor_critic_forward.1} parent=0 // pred_check
    _
  $region23: #{actor_critic_forward.1} parent=0 // pred_check_branch
    %1020 = sbr.rel (0) target = $region25
  $region24: #{actor_critic_forward.1} parent=0 // pred_region
    _
  $region25: #{actor_critic_forward.1} parent=0 // pred_fallthru
    _

</llo_original>
